<compile_context>
chip_gen: v7x
topology: tpu7x:2x2x1
jax: 0.10.0
libtpu: 0.0.40
codegen_flags: <defaults>
</compile_context>

<pallas_src>
import functools

import numpy as np
import jax
import jax.numpy as jnp
from jax.experimental import pallas as pl
from jax.experimental.pallas import tpu as pltpu


# ----------------------------------------------------------------------------
# Pallas kernel
# ----------------------------------------------------------------------------
def sketch_loss_kernel(proj_ref, sk_ref, sig_ref, out_ref, *,
                       num_sketches, proximal_surface, delta, occ_eps, clamp_t):
    """proj_ref: (S, 2, TN)  sk_ref: (S, M, 2)  sig_ref / out_ref: (1, TN)."""
    tn = out_ref.shape[-1]

    # --- sum over sketches of min Euclidean distance (sqrt AFTER the min) ---
    dsum = jnp.zeros((1, tn), jnp.float32)
    for s in range(num_sketches):            # S is a tiny compile-time constant
        proj = proj_ref[s]                   # (2, TN) projected points, sketch s
        sk = sk_ref[s]                       # (M, 2)  sketch pixels (pad = 1e6)
        px = proj[0:1, :]                    # (1, TN)
        py = proj[1:2, :]                    # (1, TN)
        skx = sk[:, 0:1]                     # (M, 1)
        sky = sk[:, 1:2]                     # (M, 1)
        dx = skx - px                        # (M, TN)  sublane = sketch pixel,
        dy = sky - py                        #          lane    = query point
        d2 = dx * dx + dy * dy
        min_d2 = jnp.min(d2, axis=0, keepdims=True)   # (1, TN) sublane reduce
        dsum = dsum + jnp.sqrt(min_d2)                # one sqrt per point

    # --- finalize: occ / weights / nerf_occ / weighted cross-entropy --------
    D = dsum * (1.0 / float(num_sketches))            # mean over sketches
    occ = (D < occ_eps).astype(jnp.float32)
    weights = 1.0 - jnp.exp(-(D * D) / (2.0 * proximal_surface * proximal_surface))

    sig = sig_ref[...]                                # (1, TN)
    nerf_occ = jnp.clip(1.0 - jnp.exp(-delta * sig), 0.0, 1.1)
    q = jnp.clip(nerf_occ, clamp_t, 1.0 - clamp_t)
    one_minus_q = jnp.clip(1.0 - nerf_occ, clamp_t, 1.0 - clamp_t)
    ce = -(occ * jnp.log(q) + (1.0 - occ) * jnp.log(one_minus_q))

    out_ref[...] = ce * weights                       # per-point weighted loss


def sketch_loss_pallas(proj, sketch_pts, sigmas, *,
                       proximal_surface, delta=0.07, occ_eps=1e-3, clamp_t=1e-4,
                       tn=128):
    """proj: (S, N, 2) f32, sketch_pts: (S, M, 2) f32 (rows padded with 1e6),
    sigmas: (N,) f32  ->  scalar loss."""
    S, N, _ = proj.shape
    M = sketch_pts.shape[1]

    n_tiles = pl.cdiv(N, tn)
    n_pad = n_tiles * tn

    # Lane-dense layout: points on lanes.
    proj_t = jnp.transpose(proj.astype(jnp.float32), (0, 2, 1))      # (S, 2, N)
    sig = sigmas.astype(jnp.float32).reshape(1, N)                   # (1, N)
    if n_pad != N:
        proj_t = jnp.pad(proj_t, ((0, 0), (0, 0), (0, n_pad - N)))
        sig = jnp.pad(sig, ((0, 0), (0, n_pad - N)))

    kernel = functools.partial(
        sketch_loss_kernel,
        num_sketches=S,
        proximal_surface=float(proximal_surface),
        delta=float(delta),
        occ_eps=float(occ_eps),
        clamp_t=float(clamp_t),
    )

    per_point = pl.pallas_call(
        kernel,
        out_shape=jax.ShapeDtypeStruct((1, n_pad), jnp.float32),
        grid_spec=pltpu.PrefetchScalarGridSpec(
            num_scalar_prefetch=0,
            grid=(n_tiles,),                                          # parallel N tiles
            in_specs=[
                pl.BlockSpec((S, 2, tn), lambda i: (0, 0, i)),        # projected points tile
                pl.BlockSpec((S, M, 2), lambda i: (0, 0, 0)),         # sketch pixels (resident)
                pl.BlockSpec((1, tn), lambda i: (0, i)),              # sigmas tile (lane-dense)
            ],
            out_specs=pl.BlockSpec((1, tn), lambda i: (0, i)),        # per-point weighted CE
        ),
        compiler_params=pltpu.CompilerParams(
            dimension_semantics=("parallel",)),
    )(proj_t, sketch_pts.astype(jnp.float32), sig)

    # Final scalar reduction (O(N), negligible) in the wrapper keeps the grid
    # axis legally "parallel" and the kernel stores unmasked.
    return jnp.sum(per_point[0, :N])


# ----------------------------------------------------------------------------
# Glue (torch.no_grad preprocessing in the reference): projection + sketch-point
# precompute.  Mirrors rend_utils.batch_proj_points2image / precompute_sketch_points.
# ----------------------------------------------------------------------------
def batch_proj_points2image(xyzs, poses, intrinsics, H, W, normalize=True):
    """xyzs (N,3), poses (S,4,4) cam-to-world, intrinsics (S,4)=[fx,fy,cx,cy] -> (S,N,2)."""
    w2c = jnp.linalg.inv(poses)                                     # (S, 4, 4)
    xyz_h = jnp.concatenate([xyzs, jnp.ones((xyzs.shape[0], 1), xyzs.dtype)], axis=-1)
    cam = jnp.einsum('sij,nj->sni', w2c, xyz_h)[..., :3]            # (S, N, 3)
    fx = intrinsics[:, 0:1]
    fy = intrinsics[:, 1:2]
    cx = intrinsics[:, 2:3]
    cy = intrinsics[:, 3:4]
    u = fx * cam[..., 0] / cam[..., 2] + cx
    v = fy * cam[..., 1] / cam[..., 2] + cy
    proj = jnp.round(jnp.stack([u, v], axis=-1))                    # (S, N, 2)
    if normalize:
        proj = proj / jnp.array([H, W], dtype=jnp.float32).reshape(1, 1, 2)
    return proj.astype(jnp.float32)


def precompute_sketch_points(canvases_np, H, W, M, normalize=True, pad_value=1e6):
    """canvases (S,H,W) numpy -> (S, M, 2) padded sketch point coordinates."""
    S = canvases_np.shape[0]
    pts = np.full((S, M, 2), pad_value, dtype=np.float32)   # pad far away -> never the min
    for i in range(S):
        p = np.argwhere(canvases_np[i] > 0.5).astype(np.float32)[:, [1, 0]]  # (K, 2) = (x, y)
        if normalize:
            p = p / np.array([H, W], dtype=np.float32).reshape(1, 2)
        K = p.shape[0]
        assert 0 < K <= M, f"sketch {i}: {K} points does not fit padding M={M}"
        pts[i, :K, :] = p
    return jnp.asarray(pts)


def sketch_loss_reference(proj, sketch_pts, sigmas, *, proximal_surface, delta=0.07):
    """Pure-JAX reference mirroring the PyTorch forward (occ = D < 1e-3 branch)."""
    diff = proj[:, :, None, :] - sketch_pts[:, None, :, :]          # (S, N, M, 2)
    dist = jnp.sqrt(jnp.sum(diff * diff, axis=-1))                  # (S, N, M)
    D = jnp.mean(jnp.min(dist, axis=-1), axis=0)                    # (N,)
    occ = (D < 1e-3).astype(jnp.float32)
    weights = 1.0 - jnp.exp(-(D * D) / (2.0 * proximal_surface ** 2))
    nerf_occ = jnp.clip(1.0 - jnp.exp(-delta * sigmas), 0.0, 1.1)
    T = 1e-4
    q = jnp.clip(nerf_occ, T, 1.0 - T)
    omq = jnp.clip(1.0 - nerf_occ, T, 1.0 - T)
    ce = -(occ * jnp.log(q) + (1.0 - occ) * jnp.log(omq))
    return jnp.sum(ce * weights)


# TODO(synk): base_mesh.winding_number and nerf_gt.density occupancy branches are not
# implemented (both are None here, so the reference falls back to occ = (D < 1e-3)).

# ----------------------------------------------------------------------------
if __name__ == "__main__":
    key = jax.random.PRNGKey(0)
    k_canvas, k_xyz, k_sigma = jax.random.split(key, 3)

    S, H, W = 3, 16, 16          # num sketches, canvas size
    N = 256                      # number of query points (xyzs)
    M = 128                      # padded max number of sketch pixels per sketch

    # Binary sketch canvases (S, H, W)
    canvases = (jax.random.uniform(k_canvas, (S, H, W)) > 0.7).astype(jnp.float32)
    sketch_pts = precompute_sketch_points(np.asarray(canvases), H, W, M)     # (S, M, 2)

    # Query points and densities
    xyzs = jax.random.uniform(k_xyz, (N, 3), minval=-1.0, maxval=1.0, dtype=jnp.float32)
    sigmas = jnp.abs(jax.random.normal(k_sigma, (N,), dtype=jnp.float32)) * 10.0

    # Deterministic cameras: identity rotation, camera behind the points so z_cam > 0.
    poses_np = np.tile(np.eye(4, dtype=np.float32), (S, 1, 1))
    for i in range(S):
        poses_np[i, 2, 3] = -4.0 - 0.5 * i
        poses_np[i, 0, 3] = 0.2 * i
    poses = jnp.asarray(poses_np)                                            # (S, 4, 4)
    intrinsics = jnp.tile(
        jnp.array([[float(W), float(H), W / 2.0, H / 2.0]], dtype=jnp.float32), (S, 1)
    )                                                                        # (S, 4)

    proj = batch_proj_points2image(xyzs, poses, intrinsics, H, W, normalize=True)  # (S, N, 2)

    loss = sketch_loss_pallas(proj, sketch_pts, sigmas,
                              proximal_surface=0.2, delta=0.07)
    jax.block_until_ready(loss)

    # Correctness check against the pure-JAX reference (loose fp32 tolerance).
    ref = sketch_loss_reference(proj, sketch_pts, sigmas, proximal_surface=0.2, delta=0.07)
    jax.block_until_ready(ref)
    np.testing.assert_allclose(np.asarray(loss), np.asarray(ref), rtol=1e-2, atol=1e-3)

    print("KERNEL_OK")
</pallas_src>

<mosaic_0001>
module attributes {stable_mosaic.version = 11 : i64} {
  func.func @sketch_loss_kernel(%arg0: i32, %arg1: memref<3x2x128xf32, #tpu.memory_space<vmem>>, %arg2: memref<3x128x2xf32, #tpu.memory_space<vmem>>, %arg3: memref<1x128xf32, #tpu.memory_space<vmem>>, %arg4: memref<1x128xf32, #tpu.memory_space<vmem>>) attributes {dimension_semantics = [#tpu.dimension_semantics<parallel>], iteration_bounds = array<i64: 2>, scalar_prefetch = 0 : i64, scratch_operands = 0 : i64, tpu.core_type = #tpu.core_type<tc>, window_params = [{transform_indices = @transform_0, window_bounds = array<i64: 3, 2, 128>}, {pipeline_mode = #tpu.pipeline_mode<synchronous>, transform_indices = @transform_1, window_bounds = array<i64: 3, 128, 2>}, {transform_indices = @transform_2, window_bounds = array<i64: 1, 128>}, {transform_indices = @transform_3, window_bounds = array<i64: 1, 128>}]} {
    %cst = arith.constant 0.000000e+00 : f32
    %0 = vector.broadcast %cst : f32 to vector<1x128xf32>
    %c0 = arith.constant 0 : index
    %c0_0 = arith.constant 0 : index
    %c0_1 = arith.constant 0 : index
    %1 = vector.load %arg1[%c0, %c0_0, %c0_1] : memref<3x2x128xf32, #tpu.memory_space<vmem>>, vector<1x2x128xf32>
    %2 = vector.shape_cast %1 : vector<1x2x128xf32> to vector<2x128xf32>
    %c0_2 = arith.constant 0 : index
    %c0_3 = arith.constant 0 : index
    %c0_4 = arith.constant 0 : index
    %3 = vector.load %arg2[%c0_2, %c0_3, %c0_4] : memref<3x128x2xf32, #tpu.memory_space<vmem>>, vector<1x128x2xf32>
    %4 = vector.shape_cast %3 : vector<1x128x2xf32> to vector<128x2xf32>
    %5 = vector.extract_strided_slice %2 {offsets = [0, 0], sizes = [1, 128], strides = [1, 1]} : vector<2x128xf32> to vector<1x128xf32>
    %6 = vector.extract_strided_slice %2 {offsets = [1, 0], sizes = [1, 128], strides = [1, 1]} : vector<2x128xf32> to vector<1x128xf32>
    %7 = vector.extract_strided_slice %4 {offsets = [0, 0], sizes = [128, 1], strides = [1, 1]} : vector<128x2xf32> to vector<128x1xf32>
    %8 = vector.extract_strided_slice %4 {offsets = [0, 1], sizes = [128, 1], strides = [1, 1]} : vector<128x2xf32> to vector<128x1xf32>
    %9 = vector.broadcast %7 : vector<128x1xf32> to vector<128x128xf32>
    %10 = vector.broadcast %5 : vector<1x128xf32> to vector<128x128xf32>
    %11 = arith.subf %9, %10 : vector<128x128xf32>
    %12 = vector.broadcast %8 : vector<128x1xf32> to vector<128x128xf32>
    %13 = vector.broadcast %6 : vector<1x128xf32> to vector<128x128xf32>
    %14 = arith.subf %12, %13 : vector<128x128xf32>
    %15 = arith.mulf %11, %11 : vector<128x128xf32>
    %16 = arith.mulf %14, %14 : vector<128x128xf32>
    %17 = arith.addf %15, %16 : vector<128x128xf32>
    %cst_5 = arith.constant dense<0x7F800000> : vector<128xf32>
    %18 = vector.multi_reduction <minimumf>, %17, %cst_5 [0] : vector<128x128xf32> to vector<128xf32>
    %19 = vector.shape_cast %18 : vector<128xf32> to vector<1x128xf32>
    %20 = math.sqrt %19 : vector<1x128xf32>
    %21 = arith.addf %0, %20 : vector<1x128xf32>
    %c1 = arith.constant 1 : index
    %c0_6 = arith.constant 0 : index
    %c0_7 = arith.constant 0 : index
    %22 = vector.load %arg1[%c1, %c0_6, %c0_7] : memref<3x2x128xf32, #tpu.memory_space<vmem>>, vector<1x2x128xf32>
    %23 = vector.shape_cast %22 : vector<1x2x128xf32> to vector<2x128xf32>
    %c1_8 = arith.constant 1 : index
    %c0_9 = arith.constant 0 : index
    %c0_10 = arith.constant 0 : index
    %24 = vector.load %arg2[%c1_8, %c0_9, %c0_10] : memref<3x128x2xf32, #tpu.memory_space<vmem>>, vector<1x128x2xf32>
    %25 = vector.shape_cast %24 : vector<1x128x2xf32> to vector<128x2xf32>
    %26 = vector.extract_strided_slice %23 {offsets = [0, 0], sizes = [1, 128], strides = [1, 1]} : vector<2x128xf32> to vector<1x128xf32>
    %27 = vector.extract_strided_slice %23 {offsets = [1, 0], sizes = [1, 128], strides = [1, 1]} : vector<2x128xf32> to vector<1x128xf32>
    %28 = vector.extract_strided_slice %25 {offsets = [0, 0], sizes = [128, 1], strides = [1, 1]} : vector<128x2xf32> to vector<128x1xf32>
    %29 = vector.extract_strided_slice %25 {offsets = [0, 1], sizes = [128, 1], strides = [1, 1]} : vector<128x2xf32> to vector<128x1xf32>
    %30 = vector.broadcast %28 : vector<128x1xf32> to vector<128x128xf32>
    %31 = vector.broadcast %26 : vector<1x128xf32> to vector<128x128xf32>
    %32 = arith.subf %30, %31 : vector<128x128xf32>
    %33 = vector.broadcast %29 : vector<128x1xf32> to vector<128x128xf32>
    %34 = vector.broadcast %27 : vector<1x128xf32> to vector<128x128xf32>
    %35 = arith.subf %33, %34 : vector<128x128xf32>
    %36 = arith.mulf %32, %32 : vector<128x128xf32>
    %37 = arith.mulf %35, %35 : vector<128x128xf32>
    %38 = arith.addf %36, %37 : vector<128x128xf32>
    %cst_11 = arith.constant dense<0x7F800000> : vector<128xf32>
    %39 = vector.multi_reduction <minimumf>, %38, %cst_11 [0] : vector<128x128xf32> to vector<128xf32>
    %40 = vector.shape_cast %39 : vector<128xf32> to vector<1x128xf32>
    %41 = math.sqrt %40 : vector<1x128xf32>
    %42 = arith.addf %21, %41 : vector<1x128xf32>
    %c2 = arith.constant 2 : index
    %c0_12 = arith.constant 0 : index
    %c0_13 = arith.constant 0 : index
    %43 = vector.load %arg1[%c2, %c0_12, %c0_13] : memref<3x2x128xf32, #tpu.memory_space<vmem>>, vector<1x2x128xf32>
    %44 = vector.shape_cast %43 : vector<1x2x128xf32> to vector<2x128xf32>
    %c2_14 = arith.constant 2 : index
    %c0_15 = arith.constant 0 : index
    %c0_16 = arith.constant 0 : index
    %45 = vector.load %arg2[%c2_14, %c0_15, %c0_16] : memref<3x128x2xf32, #tpu.memory_space<vmem>>, vector<1x128x2xf32>
    %46 = vector.shape_cast %45 : vector<1x128x2xf32> to vector<128x2xf32>
    %47 = vector.extract_strided_slice %44 {offsets = [0, 0], sizes = [1, 128], strides = [1, 1]} : vector<2x128xf32> to vector<1x128xf32>
    %48 = vector.extract_strided_slice %44 {offsets = [1, 0], sizes = [1, 128], strides = [1, 1]} : vector<2x128xf32> to vector<1x128xf32>
    %49 = vector.extract_strided_slice %46 {offsets = [0, 0], sizes = [128, 1], strides = [1, 1]} : vector<128x2xf32> to vector<128x1xf32>
    %50 = vector.extract_strided_slice %46 {offsets = [0, 1], sizes = [128, 1], strides = [1, 1]} : vector<128x2xf32> to vector<128x1xf32>
    %51 = vector.broadcast %49 : vector<128x1xf32> to vector<128x128xf32>
    %52 = vector.broadcast %47 : vector<1x128xf32> to vector<128x128xf32>
    %53 = arith.subf %51, %52 : vector<128x128xf32>
    %54 = vector.broadcast %50 : vector<128x1xf32> to vector<128x128xf32>
    %55 = vector.broadcast %48 : vector<1x128xf32> to vector<128x128xf32>
    %56 = arith.subf %54, %55 : vector<128x128xf32>
    %57 = arith.mulf %53, %53 : vector<128x128xf32>
    %58 = arith.mulf %56, %56 : vector<128x128xf32>
    %59 = arith.addf %57, %58 : vector<128x128xf32>
    %cst_17 = arith.constant dense<0x7F800000> : vector<128xf32>
    %60 = vector.multi_reduction <minimumf>, %59, %cst_17 [0] : vector<128x128xf32> to vector<128xf32>
    %61 = vector.shape_cast %60 : vector<128xf32> to vector<1x128xf32>
    %62 = math.sqrt %61 : vector<1x128xf32>
    %63 = arith.addf %42, %62 : vector<1x128xf32>
    %cst_18 = arith.constant 0.333333343 : f32
    %64 = vector.broadcast %cst_18 : f32 to vector<1x128xf32>
    %65 = arith.mulf %63, %64 : vector<1x128xf32>
    %cst_19 = arith.constant 1.000000e-03 : f32
    %66 = vector.broadcast %cst_19 : f32 to vector<1x128xf32>
    %67 = arith.cmpf olt, %65, %66 : vector<1x128xf32>
    %68 = arith.extui %67 : vector<1x128xi1> to vector<1x128xi32>
    %69 = arith.sitofp %68 : vector<1x128xi32> to vector<1x128xf32>
    %70 = arith.mulf %65, %65 : vector<1x128xf32>
    %cst_20 = arith.constant 0.000000e+00 : f32
    %71 = vector.broadcast %cst_20 : f32 to vector<1x128xf32>
    %72 = arith.subf %71, %70 : vector<1x128xf32>
    %cst_21 = arith.constant 8.000000e-02 : f32
    %73 = vector.broadcast %cst_21 : f32 to vector<1x128xf32>
    %74 = arith.divf %72, %73 : vector<1x128xf32>
    %75 = math.exp %74 : vector<1x128xf32>
    %cst_22 = arith.constant 1.000000e+00 : f32
    %76 = vector.broadcast %cst_22 : f32 to vector<1x128xf32>
    %77 = arith.subf %76, %75 : vector<1x128xf32>
    %c0_23 = arith.constant 0 : index
    %c0_24 = arith.constant 0 : index
    %78 = vector.load %arg3[%c0_23, %c0_24] : memref<1x128xf32, #tpu.memory_space<vmem>>, vector<1x128xf32>
    %cst_25 = arith.constant -7.000000e-02 : f32
    %79 = vector.broadcast %cst_25 : f32 to vector<1x128xf32>
    %80 = arith.mulf %79, %78 : vector<1x128xf32>
    %81 = math.exp %80 : vector<1x128xf32>
    %cst_26 = arith.constant 1.000000e+00 : f32
    %82 = vector.broadcast %cst_26 : f32 to vector<1x128xf32>
    %83 = arith.subf %82, %81 : vector<1x128xf32>
    %cst_27 = arith.constant 0.000000e+00 : f32
    %cst_28 = arith.constant 1.100000e+00 : f32
    %84 = vector.broadcast %cst_27 : f32 to vector<1x128xf32>
    %85 = arith.maximumf %84, %83 : vector<1x128xf32>
    %86 = vector.broadcast %cst_28 : f32 to vector<1x128xf32>
    %87 = arith.minimumf %86, %85 : vector<1x128xf32>
    %cst_29 = arith.constant 9.99999974E-5 : f32
    %cst_30 = arith.constant 0.999899983 : f32
    %88 = vector.broadcast %cst_29 : f32 to vector<1x128xf32>
    %89 = arith.maximumf %88, %87 : vector<1x128xf32>
    %90 = vector.broadcast %cst_30 : f32 to vector<1x128xf32>
    %91 = arith.minimumf %90, %89 : vector<1x128xf32>
    %cst_31 = arith.constant 1.000000e+00 : f32
    %92 = vector.broadcast %cst_31 : f32 to vector<1x128xf32>
    %93 = arith.subf %92, %87 : vector<1x128xf32>
    %cst_32 = arith.constant 9.99999974E-5 : f32
    %cst_33 = arith.constant 0.999899983 : f32
    %94 = vector.broadcast %cst_32 : f32 to vector<1x128xf32>
    %95 = arith.maximumf %94, %93 : vector<1x128xf32>
    %96 = vector.broadcast %cst_33 : f32 to vector<1x128xf32>
    %97 = arith.minimumf %96, %95 : vector<1x128xf32>
    %98 = math.log %91 : vector<1x128xf32>
    %99 = arith.mulf %69, %98 : vector<1x128xf32>
    %cst_34 = arith.constant 1.000000e+00 : f32
    %100 = vector.broadcast %cst_34 : f32 to vector<1x128xf32>
    %101 = arith.subf %100, %69 : vector<1x128xf32>
    %102 = math.log %97 : vector<1x128xf32>
    %103 = arith.mulf %101, %102 : vector<1x128xf32>
    %104 = arith.addf %99, %103 : vector<1x128xf32>
    %cst_35 = arith.constant 0.000000e+00 : f32
    %105 = vector.broadcast %cst_35 : f32 to vector<1x128xf32>
    %106 = arith.subf %105, %104 : vector<1x128xf32>
    %107 = arith.mulf %106, %77 : vector<1x128xf32>
    %c0_36 = arith.constant 0 : index
    %c0_37 = arith.constant 0 : index
    %108 = vector.load %arg4[%c0_36, %c0_37] : memref<1x128xf32, #tpu.memory_space<vmem>>, vector<1x128xf32>
    tpu.vector_store %arg4[%c0_36, %c0_37], %107 {strides = array<i32>} : memref<1x128xf32, #tpu.memory_space<vmem>>, vector<1x128xf32>,
    return
  }
  func.func @transform_0(%arg0: i32) -> (i32, i32, i32) {
    %c0_i32 = arith.constant 0 : i32
    %c0_i32_0 = arith.constant 0 : i32
    %c0_i32_1 = arith.constant 0 : i32
    return %c0_i32, %c0_i32_0, %arg0 : i32, i32, i32
  }
  func.func @transform_1(%arg0: i32) -> (i32, i32, i32) {
    %c0_i32 = arith.constant 0 : i32
    %c0_i32_0 = arith.constant 0 : i32
    %c0_i32_1 = arith.constant 0 : i32
    %c0_i32_2 = arith.constant 0 : i32
    return %c0_i32, %c0_i32_0, %c0_i32_1 : i32, i32, i32
  }
  func.func @transform_2(%arg0: i32) -> (i32, i32) {
    %c0_i32 = arith.constant 0 : i32
    %c0_i32_0 = arith.constant 0 : i32
    return %c0_i32, %arg0 : i32, i32
  }
  func.func @transform_3(%arg0: i32) -> (i32, i32) {
    %c0_i32 = arith.constant 0 : i32
    %c0_i32_0 = arith.constant 0 : i32
    return %c0_i32, %arg0 : i32, i32
  }
}

</mosaic_0001>

<llo_original>
// kernel: tpu_custom_call.1
$region0: #{tpu_custom_call.1}
  #allocation0 [shape = 'u32[]', space=smem, size = 0x4, offset = 0x4, fixed_abs, tag = 'smem constant byte address 0x4 - core index']
  #allocation1 [shape = 'u32[144,128]{1,0:T(1,128)}', space=vmem, size = 0x12000, scoped, tag = 'internal scratch']
  %s0 = inlined_call_operand.vmem [shape: f32[3,2,256], index: 0, kind: input, shape index: {}]
  %s1 = inlined_call_operand.vmem [shape: f32[3,128,2], index: 1, kind: input, shape index: {}]
  %s2 = inlined_call_operand.vmem [shape: f32[1,256], index: 2, kind: input, shape index: {}]
  %s3 = inlined_call_operand.hbm [shape: f32[1,256], index: 3, kind: output, shape index: {}]
  %s4 = sld [smem:[#allocation0]]
  $region79: #{tpu_custom_call.1} parent=0
    _
  %s6 = ssub.s32 1, %s4
  %s7 = scalar_select 0, %s6, %s4
  $region1: #{tpu_custom_call.1} parent=0
    #allocation2 [shape = 'u8[6144]{0}', space=vmem, size = 0x1800, scoped, tag = 'input window, operand 0']
    #allocation3 [shape = 'u8[1024]{0}', space=vmem, size = 0x400, scoped, tag = 'output window, operand 0']
    #allocation4 [shape = 's32[2]{0}', space=sflag, size = 0x8, scoped, tag = 'scoped memory for tpu_custom_call.1']
    %8 = vsyncpa [#allocation4], 0
    %s9 = scalar_lea.sflag [#allocation4], 1
    %10 = vsyncpa %s9, 0
    loop: start=0, step=1, limit=4
    $region2: #{tpu_custom_call.1} parent=1 // loop_pre_header
      _
    $region3: #{tpu_custom_call.1} parent=1 // loop_header
      %s12 = sphi 0, %s16
      %p13 = scmp.ge.s32.totalorder %s12, 4
      %s22 = sphi 0, %s24
      %s25 = sphi 0, %s22
      %s26 = sphi 0, %s25
      %s42 = sphi 0, %s26
      %s46 = sphi 0, %s46
      %s48 = sphi 0, %s46
      %s49 = sphi 0, %s48
      %s63 = sphi 0, %s49
      %s69 = sphi 0, %s71
      %s72 = sphi 0, %s69
      %s73 = sphi 0, %s72
      %s89 = sphi 0, %s73
      %s95 = sphi 0, %s97
      %s98 = sphi 0, %s95
      %s99 = sphi 0, %s98
      %s115 = sphi 0, %s99
    $region4: #{tpu_custom_call.1} parent=1 // loop_header_branch
      %15 = sbr.rel (%p13) target = $region8
    $region5: #{tpu_custom_call.1} parent=1 // loop_body
      %s17 = ssub.s32 %s12, 1
      %s18 = ssub.s32 %s12, 2
      %s19 = sadd.s32 %s12, 1
      %s20 = ssub.s32 %s12, %s19
      %p21 = scmp.eq.s32.totalorder %s20, 0
      %s23 = sadd.s32 %s22, 1
      %s24 = scalar_select %p21, %s22, %s23
      %p27 = pneg %p21
      %p28 = scmp.eq.s32.totalorder %s12, 1
      %p29 = por %p27, %p28
      %p30 = scmp.ne.s32.totalorder %s22, %s25
      %p31 = scmp.eq.s32.totalorder %s12, 0
      %p32 = por %p30, %p31
      %p33 = scmp.ne.s32.totalorder %s22, %s25
      %p34 = scmp.eq.s32.totalorder %s17, 1
      %p35 = por %p33, %p34
      %p36 = scmp.ne.s32.totalorder %s25, %s26
      %p37 = scmp.eq.s32.totalorder %s17, 0
      %p38 = por %p36, %p37
      %p39 = scmp.ne.s32.totalorder %s25, %s26
      %p40 = scmp.eq.s32.totalorder %s18, 1
      %p41 = por %p39, %p40
      %p43 = scmp.ne.s32.totalorder %s26, %s42
      %p44 = scmp.eq.s32.totalorder %s18, 0
      %p45 = por %p43, %p44
      %s47 = sadd.s32 %s46, 1
      %p50 = scmp.eq.s32.totalorder %s12, 1
      %p51 = scmp.ne.s32.totalorder %s46, %s48
      %p52 = scmp.eq.s32.totalorder %s12, 0
      %p53 = por %p51, %p52
      %p54 = scmp.ne.s32.totalorder %s46, %s48
      %p55 = scmp.eq.s32.totalorder %s17, 1
      %p56 = por %p54, %p55
      %p57 = scmp.ne.s32.totalorder %s48, %s49
      %p58 = scmp.eq.s32.totalorder %s17, 0
      %p59 = por %p57, %p58
      %p60 = scmp.ne.s32.totalorder %s48, %s49
      %p61 = scmp.eq.s32.totalorder %s18, 1
      %p62 = por %p60, %p61
      %p64 = scmp.ne.s32.totalorder %s49, %s63
      %p65 = scmp.eq.s32.totalorder %s18, 0
      %p66 = por %p64, %p65
      %s67 = ssub.s32 %s12, %s19
      %p68 = scmp.eq.s32.totalorder %s67, 0
      %s70 = sadd.s32 %s69, 1
      %s71 = scalar_select %p68, %s69, %s70
      %p74 = pneg %p68
      %p75 = scmp.eq.s32.totalorder %s12, 1
      %p76 = por %p74, %p75
      %p77 = scmp.ne.s32.totalorder %s69, %s72
      %p78 = scmp.eq.s32.totalorder %s12, 0
      %p79 = por %p77, %p78
      %p80 = scmp.ne.s32.totalorder %s69, %s72
      %p81 = scmp.eq.s32.totalorder %s17, 1
      %p82 = por %p80, %p81
      %p83 = scmp.ne.s32.totalorder %s72, %s73
      %p84 = scmp.eq.s32.totalorder %s17, 0
      %p85 = por %p83, %p84
      %p86 = scmp.ne.s32.totalorder %s72, %s73
      %p87 = scmp.eq.s32.totalorder %s18, 1
      %p88 = por %p86, %p87
      %p90 = scmp.ne.s32.totalorder %s73, %s89
      %p91 = scmp.eq.s32.totalorder %s18, 0
      %p92 = por %p90, %p91
      %s93 = ssub.s32 %s12, %s19
      %p94 = scmp.eq.s32.totalorder %s93, 0
      %s96 = sadd.s32 %s95, 1
      %s97 = scalar_select %p94, %s95, %s96
      %p100 = pneg %p94
      %p101 = scmp.eq.s32.totalorder %s12, 1
      %p102 = por %p100, %p101
      %p103 = scmp.ne.s32.totalorder %s95, %s98
      %p104 = scmp.eq.s32.totalorder %s12, 0
      %p105 = por %p103, %p104
      %p106 = scmp.ne.s32.totalorder %s95, %s98
      %p107 = scmp.eq.s32.totalorder %s17, 1
      %p108 = por %p106, %p107
      %p109 = scmp.ne.s32.totalorder %s98, %s99
      %p110 = scmp.eq.s32.totalorder %s17, 0
      %p111 = por %p109, %p110
      %p112 = scmp.ne.s32.totalorder %s98, %s99
      %p113 = scmp.eq.s32.totalorder %s18, 1
      %p114 = por %p112, %p113
      %p116 = scmp.ne.s32.totalorder %s99, %s115
      %p117 = scmp.eq.s32.totalorder %s18, 0
      %p118 = por %p116, %p117
      %p119 = scmp.le.s32.totalorder 1, %s12
      %p120 = scmp.lt.s32.totalorder %s12, 3
      %p121 = pnand %p119, %p120
      %p122 = pneg %p121
      // Predicated region
      $region9: #{tpu_custom_call.1} parent=5 // pred_check
        _
      $region10: #{tpu_custom_call.1} parent=5 // pred_check_branch
        %124 = sbr.rel (%p121) target = $region12
      $region11: #{tpu_custom_call.1} parent=5 // pred_region
        %s125 = ssub.s32 %s12, 1
        // Predicated region
        $region13: #{tpu_custom_call.1} parent=11 // pred_check
          %p126 = pneg %p59
        $region14: #{tpu_custom_call.1} parent=11 // pred_check_branch
          %128 = sbr.rel (%p126) target = $region16
        $region15: #{tpu_custom_call.1} parent=11 // pred_region
          _
        $region16: #{tpu_custom_call.1} parent=11 // pred_fallthru
          _
      $region12: #{tpu_custom_call.1} parent=5 // pred_fallthru
        _
      %p129 = scmp.lt.s32.totalorder %s12, 2
      // Predicated region
      $region17: #{tpu_custom_call.1} parent=5 // pred_check
        %p130 = pneg %p129
      $region18: #{tpu_custom_call.1} parent=5 // pred_check_branch
        %132 = sbr.rel (%p130) target = $region20
      $region19: #{tpu_custom_call.1} parent=5 // pred_region
        // Predicated region
        $region21: #{tpu_custom_call.1} parent=19 // pred_check
          %p133 = pneg %p32
        $region22: #{tpu_custom_call.1} parent=19 // pred_check_branch
          %135 = sbr.rel (%p133) target = $region24
        $region23: #{tpu_custom_call.1} parent=19 // pred_region
          %s136 = sand.u32 %s22, 1
          %s137 = sand.u32 %s22, 1
          %s138 = smul.addr %s137, 6
          %s139 = scalar_lea.vmem [#allocation2], %s138
          %s140 = smul.addr %s12, 2
          %s141 = scalar_lea.vmem %s0, %s140
          // Predicated region
          $region25: #{tpu_custom_call.1} parent=23 // pred_check
            _
          $region26: #{tpu_custom_call.1} parent=23 // pred_check_branch
            %143 = sbr.rel (0) target = $region28
          $region27: #{tpu_custom_call.1} parent=23 // pred_region
            // Predicated region
            $region29: #{tpu_custom_call.1} parent=27 // pred_check
              _
            $region30: #{tpu_custom_call.1} parent=27 // pred_check_branch
              %145 = sbr.rel target = $region32
            $region31: #{tpu_custom_call.1} parent=27 // pred_region
              // Predicated region
              $region44: #{tpu_custom_call.1} parent=31 // pred_check
                _
              $region45: #{tpu_custom_call.1} parent=31 // pred_check_branch
                %164 = sbr.rel (0) target = $region47
              $region46: #{tpu_custom_call.1} parent=31 // pred_region
                loop: start=0, step=1, limit=1
                $region48: #{tpu_custom_call.1} parent=46 // loop_pre_header
                  _
                $region49: #{tpu_custom_call.1} parent=46 // loop_header
                  %s167 = sphi 0, %s171
                  %p168 = scmp.ge.s32.totalorder %s167, 1
                  %s172 = sphi %s141, %s141
                  %s173 = sphi %s139, %s139
                $region50: #{tpu_custom_call.1} parent=46 // loop_header_branch
                  %170 = sbr.rel (%p168) target = $region54
                $region51: #{tpu_custom_call.1} parent=46 // loop_body
                  %v174 = vld [vmem:[%s172] sm:$0x3]
                  %175 = vst [vmem:[%s173] sm:$0x3] %v174
                  %v176 = vld [vmem:[%s172 + $0x4] sm:$0x3]
                  %177 = vst [vmem:[%s173 + $0x2] sm:$0x3] %v176
                  %v178 = vld [vmem:[%s172 + $0x8] sm:$0x3]
                  %179 = vst [vmem:[%s173 + $0x4] sm:$0x3] %v178
                $region52: #{tpu_custom_call.1} parent=46 // loop_footer
                  %s171 = sadd.s32 1, %s167
                $region53: #{tpu_custom_call.1} parent=46 // loop_footer_branch
                  %166 = sbr.rel target = $region49
                $region54: #{tpu_custom_call.1} parent=46 // loop_exit
                  _
              $region47: #{tpu_custom_call.1} parent=31 // pred_fallthru
                _
            $region32: #{tpu_custom_call.1} parent=27 // pred_fallthru
              _
            // Predicated region
            $region33: #{tpu_custom_call.1} parent=27 // pred_check
              _
            $region34: #{tpu_custom_call.1} parent=27 // pred_check_branch
              %147 = sbr.rel (0) target = $region36
            $region35: #{tpu_custom_call.1} parent=27 // pred_region
              loop: start=0, step=1, limit=1
              $region37: #{tpu_custom_call.1} parent=35 // loop_pre_header
                _
              $region38: #{tpu_custom_call.1} parent=35 // loop_header
                %s150 = sphi 0, %s154
                %p151 = scmp.ge.s32.totalorder %s150, 1
                %s155 = sphi %s141, %s141
                %s156 = sphi %s139, %s139
              $region39: #{tpu_custom_call.1} parent=35 // loop_header_branch
                %153 = sbr.rel (%p151) target = $region43
              $region40: #{tpu_custom_call.1} parent=35 // loop_body
                %v157 = vld [vmem:[%s155] sm:$0x3]
                %158 = vst [vmem:[%s156] sm:$0x3] %v157
                %v159 = vld [vmem:[%s155 + $0x4] sm:$0x3]
                %160 = vst [vmem:[%s156 + $0x2] sm:$0x3] %v159
                %v161 = vld [vmem:[%s155 + $0x8] sm:$0x3]
                %162 = vst [vmem:[%s156 + $0x4] sm:$0x3] %v161
              $region41: #{tpu_custom_call.1} parent=35 // loop_footer
                %s154 = sadd.s32 1, %s150
              $region42: #{tpu_custom_call.1} parent=35 // loop_footer_branch
                %149 = sbr.rel target = $region38
              $region43: #{tpu_custom_call.1} parent=35 // loop_exit
                _
            $region36: #{tpu_custom_call.1} parent=27 // pred_fallthru
              _
          $region28: #{tpu_custom_call.1} parent=23 // pred_fallthru
            _
          %180 = vnop
        $region24: #{tpu_custom_call.1} parent=19 // pred_fallthru
          _
        // Predicated region
        $region55: #{tpu_custom_call.1} parent=19 // pred_check
          %p181 = pneg %p79
        $region56: #{tpu_custom_call.1} parent=19 // pred_check_branch
          %183 = sbr.rel (%p181) target = $region58
        $region57: #{tpu_custom_call.1} parent=19 // pred_region
          %p184 = scmp.lt.s32.totalorder %s12, 1
          %s185 = scalar_select %p184, %s12, 1
          %s186 = scalar_lea.vmem %s2, %s185
        $region58: #{tpu_custom_call.1} parent=19 // pred_fallthru
          _
      $region20: #{tpu_custom_call.1} parent=5 // pred_fallthru
        _
      %p187 = scmp.le.s32.totalorder 1, %s12
      %p188 = scmp.lt.s32.totalorder %s12, 3
      %p189 = pnand %p187, %p188
      %p190 = pneg %p189
      // Predicated region
      $region59: #{tpu_custom_call.1} parent=5 // pred_check
        _
      $region60: #{tpu_custom_call.1} parent=5 // pred_check_branch
        %192 = sbr.rel (%p189) target = $region62
      $region61: #{tpu_custom_call.1} parent=5 // pred_region
        %s193 = ssub.s32 %s12, 1
        %s194 = sand.u32 %s25, 1
        %s195 = sand.u32 %s25, 1
        %s196 = smul.addr %s195, 6
        %s197 = scalar_lea.vmem [#allocation2], %s196
        // Predicated region
        $region63: #{tpu_custom_call.1} parent=61 // pred_check
          %p198 = pneg %p38
        $region64: #{tpu_custom_call.1} parent=61 // pred_check_branch
          %200 = sbr.rel (%p198) target = $region66
        $region65: #{tpu_custom_call.1} parent=61 // pred_region
          _
        $region66: #{tpu_custom_call.1} parent=61 // pred_fallthru
          _
        %s201 = sand.u32 %s25, 1
        %s202 = sand.u32 %s25, 1
        %s203 = smul.addr %s202, 6
        %s204 = scalar_lea.vmem [#allocation2], %s203
        %p205 = pneg %p38
        %p206 = pneg %p35
        %p207 = pneg %p59
        %p208 = pneg %p56
        %p209 = scmp.lt.s32.totalorder %s17, 1
        %s210 = scalar_select %p209, %s17, 1
        %s211 = scalar_lea.vmem %s2, %s210
        %p212 = pneg %p85
        %p213 = pneg %p82
        %p214 = pneg %p111
        %p215 = pneg %p108
        %s216 = sand.u32 %s98, 1
        %s217 = scalar_lea.sflag [#allocation4], %s216
        %s218 = sand.u32 %s98, 1
        %s219 = scalar_lea.vmem [#allocation3], %s218
        %p220 = scmp.lt.s32.totalorder %s17, 1
        %s221 = scalar_select %p220, %s17, 1
        %s222 = scalar_lea.vmem %s2, %s221
        %v223 = vld [vmem:[%s197] sm:$0x3]
        %v224 = vld [vmem:[%s1] sm:$0xff]
        %v225 = vld [vmem:[%s1 + $0x8] sm:$0xff]
        %v226 = vld [vmem:[%s1 + $0x10] sm:$0xff]
        %v227 = vld [vmem:[%s1 + $0x18] sm:$0xff]
        %v228 = vld [vmem:[%s1 + $0x20] sm:$0xff]
        %v229 = vld [vmem:[%s1 + $0x28] sm:$0xff]
        %v230 = vld [vmem:[%s1 + $0x30] sm:$0xff]
        %v231 = vld [vmem:[%s1 + $0x38] sm:$0xff]
        %v232 = vld [vmem:[%s1 + $0x40] sm:$0xff]
        %v233 = vld [vmem:[%s1 + $0x48] sm:$0xff]
        %v234 = vld [vmem:[%s1 + $0x50] sm:$0xff]
        %v235 = vld [vmem:[%s1 + $0x58] sm:$0xff]
        %v236 = vld [vmem:[%s1 + $0x60] sm:$0xff]
        %v237 = vld [vmem:[%s1 + $0x68] sm:$0xff]
        %v238 = vld [vmem:[%s1 + $0x70] sm:$0xff]
        %v239 = vld [vmem:[%s1 + $0x78] sm:$0xff]
        %241 = vset.pattern.permute.xlu0 0
        %242 = vperm.xlu0 %241, %v224
        %v243 = vpop.permute.xlu0 %242
        %246 = vset.pattern.permute.xlu0 0
        %247 = vperm.xlu0 %246, %v225
        %v248 = vpop.permute.xlu0 %247
        %251 = vset.pattern.permute.xlu0 0
        %252 = vperm.xlu0 %251, %v226
        %v253 = vpop.permute.xlu0 %252
        %256 = vset.pattern.permute.xlu0 0
        %257 = vperm.xlu0 %256, %v227
        %v258 = vpop.permute.xlu0 %257
        %261 = vset.pattern.permute.xlu0 0
        %262 = vperm.xlu0 %261, %v228
        %v263 = vpop.permute.xlu0 %262
        %266 = vset.pattern.permute.xlu0 0
        %267 = vperm.xlu0 %266, %v229
        %v268 = vpop.permute.xlu0 %267
        %271 = vset.pattern.permute.xlu0 0
        %272 = vperm.xlu0 %271, %v230
        %v273 = vpop.permute.xlu0 %272
        %276 = vset.pattern.permute.xlu0 0
        %277 = vperm.xlu0 %276, %v231
        %v278 = vpop.permute.xlu0 %277
        %281 = vset.pattern.permute.xlu0 0
        %282 = vperm.xlu0 %281, %v232
        %v283 = vpop.permute.xlu0 %282
        %286 = vset.pattern.permute.xlu0 0
        %287 = vperm.xlu0 %286, %v233
        %v288 = vpop.permute.xlu0 %287
        %291 = vset.pattern.permute.xlu0 0
        %292 = vperm.xlu0 %291, %v234
        %v293 = vpop.permute.xlu0 %292
        %296 = vset.pattern.permute.xlu0 0
        %297 = vperm.xlu0 %296, %v235
        %v298 = vpop.permute.xlu0 %297
        %301 = vset.pattern.permute.xlu0 0
        %302 = vperm.xlu0 %301, %v236
        %v303 = vpop.permute.xlu0 %302
        %306 = vset.pattern.permute.xlu0 0
        %307 = vperm.xlu0 %306, %v237
        %v308 = vpop.permute.xlu0 %307
        %311 = vset.pattern.permute.xlu0 0
        %312 = vperm.xlu0 %311, %v238
        %v313 = vpop.permute.xlu0 %312
        %316 = vset.pattern.permute.xlu0 0
        %317 = vperm.xlu0 %316, %v239
        %v318 = vpop.permute.xlu0 %317
        %v320 = vlaneseq
        %v321 = vshrl.u32 %v320, 7
        %v322 = vsub.s32 0, %v321
        %v323 = vrot.slane %v223, %v322
        %v324 = vsub.f32 %v243, %v323
        %v325 = vsub.f32 %v248, %v323
        %v326 = vsub.f32 %v253, %v323
        %v327 = vsub.f32 %v258, %v323
        %v328 = vsub.f32 %v263, %v323
        %v329 = vsub.f32 %v268, %v323
        %v330 = vsub.f32 %v273, %v323
        %v331 = vsub.f32 %v278, %v323
        %v332 = vsub.f32 %v283, %v323
        %v333 = vsub.f32 %v288, %v323
        %v334 = vsub.f32 %v293, %v323
        %v335 = vsub.f32 %v298, %v323
        %v336 = vsub.f32 %v303, %v323
        %v337 = vsub.f32 %v308, %v323
        %v338 = vsub.f32 %v313, %v323
        %v339 = vsub.f32 %v318, %v323
        %340 = vset.pattern.permute.xlu0 1
        %341 = vperm.xlu0 %340, %v224
        %v342 = vpop.permute.xlu0 %341
        %344 = vset.pattern.permute.xlu0 1
        %345 = vperm.xlu0 %344, %v225
        %v346 = vpop.permute.xlu0 %345
        %348 = vset.pattern.permute.xlu0 1
        %349 = vperm.xlu0 %348, %v226
        %v350 = vpop.permute.xlu0 %349
        %352 = vset.pattern.permute.xlu0 1
        %353 = vperm.xlu0 %352, %v227
        %v354 = vpop.permute.xlu0 %353
        %356 = vset.pattern.permute.xlu0 1
        %357 = vperm.xlu0 %356, %v228
        %v358 = vpop.permute.xlu0 %357
        %360 = vset.pattern.permute.xlu0 1
        %361 = vperm.xlu0 %360, %v229
        %v362 = vpop.permute.xlu0 %361
        %364 = vset.pattern.permute.xlu0 1
        %365 = vperm.xlu0 %364, %v230
        %v366 = vpop.permute.xlu0 %365
        %368 = vset.pattern.permute.xlu0 1
        %369 = vperm.xlu0 %368, %v231
        %v370 = vpop.permute.xlu0 %369
        %372 = vset.pattern.permute.xlu0 1
        %373 = vperm.xlu0 %372, %v232
        %v374 = vpop.permute.xlu0 %373
        %376 = vset.pattern.permute.xlu0 1
        %377 = vperm.xlu0 %376, %v233
        %v378 = vpop.permute.xlu0 %377
        %380 = vset.pattern.permute.xlu0 1
        %381 = vperm.xlu0 %380, %v234
        %v382 = vpop.permute.xlu0 %381
        %384 = vset.pattern.permute.xlu0 1
        %385 = vperm.xlu0 %384, %v235
        %v386 = vpop.permute.xlu0 %385
        %388 = vset.pattern.permute.xlu0 1
        %389 = vperm.xlu0 %388, %v236
        %v390 = vpop.permute.xlu0 %389
        %392 = vset.pattern.permute.xlu0 1
        %393 = vperm.xlu0 %392, %v237
        %v394 = vpop.permute.xlu0 %393
        %396 = vset.pattern.permute.xlu0 1
        %397 = vperm.xlu0 %396, %v238
        %v398 = vpop.permute.xlu0 %397
        %400 = vset.pattern.permute.xlu0 1
        %401 = vperm.xlu0 %400, %v239
        %v402 = vpop.permute.xlu0 %401
        %v404 = vlaneseq
        %v405 = vshrl.u32 %v404, 7
        %v406 = vsub.s32 1, %v405
        %v407 = vrot.slane %v223, %v406
        %v408 = vsub.f32 %v342, %v407
        %v409 = vsub.f32 %v346, %v407
        %v410 = vsub.f32 %v350, %v407
        %v411 = vsub.f32 %v354, %v407
        %v412 = vsub.f32 %v358, %v407
        %v413 = vsub.f32 %v362, %v407
        %v414 = vsub.f32 %v366, %v407
        %v415 = vsub.f32 %v370, %v407
        %v416 = vsub.f32 %v374, %v407
        %v417 = vsub.f32 %v378, %v407
        %v418 = vsub.f32 %v382, %v407
        %v419 = vsub.f32 %v386, %v407
        %v420 = vsub.f32 %v390, %v407
        %v421 = vsub.f32 %v394, %v407
        %v422 = vsub.f32 %v398, %v407
        %v423 = vsub.f32 %v402, %v407
        %v424 = vmul.f32 %v324, %v324
        %v425 = vmul.f32 %v325, %v325
        %v426 = vmul.f32 %v326, %v326
        %v427 = vmul.f32 %v327, %v327
        %v428 = vmul.f32 %v328, %v328
        %v429 = vmul.f32 %v329, %v329
        %v430 = vmul.f32 %v330, %v330
        %v431 = vmul.f32 %v331, %v331
        %v432 = vmul.f32 %v332, %v332
        %v433 = vmul.f32 %v333, %v333
        %v434 = vmul.f32 %v334, %v334
        %v435 = vmul.f32 %v335, %v335
        %v436 = vmul.f32 %v336, %v336
        %v437 = vmul.f32 %v337, %v337
        %v438 = vmul.f32 %v338, %v338
        %v439 = vmul.f32 %v339, %v339
        %v440 = vmul.f32 %v408, %v408
        %v441 = vmul.f32 %v409, %v409
        %v442 = vmul.f32 %v410, %v410
        %v443 = vmul.f32 %v411, %v411
        %v444 = vmul.f32 %v412, %v412
        %v445 = vmul.f32 %v413, %v413
        %v446 = vmul.f32 %v414, %v414
        %v447 = vmul.f32 %v415, %v415
        %v448 = vmul.f32 %v416, %v416
        %v449 = vmul.f32 %v417, %v417
        %v450 = vmul.f32 %v418, %v418
        %v451 = vmul.f32 %v419, %v419
        %v452 = vmul.f32 %v420, %v420
        %v453 = vmul.f32 %v421, %v421
        %v454 = vmul.f32 %v422, %v422
        %v455 = vmul.f32 %v423, %v423
        %v456 = vadd.f32 %v424, %v440
        %v457 = vadd.f32 %v425, %v441
        %v458 = vadd.f32 %v426, %v442
        %v459 = vadd.f32 %v427, %v443
        %v460 = vadd.f32 %v428, %v444
        %v461 = vadd.f32 %v429, %v445
        %v462 = vadd.f32 %v430, %v446
        %v463 = vadd.f32 %v431, %v447
        %v464 = vadd.f32 %v432, %v448
        %v465 = vadd.f32 %v433, %v449
        %v466 = vadd.f32 %v434, %v450
        %v467 = vadd.f32 %v435, %v451
        %v468 = vadd.f32 %v436, %v452
        %v469 = vadd.f32 %v437, %v453
        %v470 = vadd.f32 %v438, %v454
        %v471 = vadd.f32 %v439, %v455
        %v472 = vmin.f32 %v456, %v460
        %v473 = vmin.f32 %v457, %v461
        %v474 = vmin.f32 %v458, %v462
        %v475 = vmin.f32 %v459, %v463
        %v476 = vmin.f32 %v472, %v464
        %v477 = vmin.f32 %v473, %v465
        %v478 = vmin.f32 %v474, %v466
        %v479 = vmin.f32 %v475, %v467
        %v480 = vmin.f32 %v476, %v468
        %v481 = vmin.f32 %v477, %v469
        %v482 = vmin.f32 %v478, %v470
        %v483 = vmin.f32 %v479, %v471
        %v484 = vmin.f32 %v480, %v481
        %v485 = vmin.f32 %v482, %v483
        %v486 = vmin.f32 %v484, %v485
        %v487 = vrot.slane %v486, 4
        %v488 = vmin.f32 %v486, %v487
        %v489 = vrot.slane %v488, 2
        %v490 = vmin.f32 %v488, %v489
        %v491 = vrot.slane %v490, 1
        %v492 = vmin.f32 %v490, %v491
        %v493 = vrsqrt.pop %v492
        %v494 = vmul.f32 %v492, %v493
        %vm495 = vcmp.eq.f32.partialorder %v492, inf
        %v496 = vsel %vm495, %v492, %v494
        %vm497 = vcmp.eq.f32.partialorder %v492, 0.0
        %v498 = vand.u32 %v492, 2147483648
        %v499 = vsel %vm497, %v498, %v496
        %v500 = vadd.f32 %v499, 0.0
        %s501 = scalar_lea.vmem %s197, 2 [#allocation2]
        %v502 = vld [vmem:[%s501] sm:$0x3]
        %s503 = scalar_lea.vmem %s1, 128
        %v504 = vld [vmem:[%s503] sm:$0xff]
        %v505 = vld [vmem:[%s503 + $0x8] sm:$0xff]
        %v506 = vld [vmem:[%s503 + $0x10] sm:$0xff]
        %v507 = vld [vmem:[%s503 + $0x18] sm:$0xff]
        %v508 = vld [vmem:[%s503 + $0x20] sm:$0xff]
        %v509 = vld [vmem:[%s503 + $0x28] sm:$0xff]
        %v510 = vld [vmem:[%s503 + $0x30] sm:$0xff]
        %v511 = vld [vmem:[%s503 + $0x38] sm:$0xff]
        %v512 = vld [vmem:[%s503 + $0x40] sm:$0xff]
        %v513 = vld [vmem:[%s503 + $0x48] sm:$0xff]
        %v514 = vld [vmem:[%s503 + $0x50] sm:$0xff]
        %v515 = vld [vmem:[%s503 + $0x58] sm:$0xff]
        %v516 = vld [vmem:[%s503 + $0x60] sm:$0xff]
        %v517 = vld [vmem:[%s503 + $0x68] sm:$0xff]
        %v518 = vld [vmem:[%s503 + $0x70] sm:$0xff]
        %v519 = vld [vmem:[%s503 + $0x78] sm:$0xff]
        %521 = vset.pattern.permute.xlu0 0
        %522 = vperm.xlu0 %521, %v504
        %v523 = vpop.permute.xlu0 %522
        %526 = vset.pattern.permute.xlu0 0
        %527 = vperm.xlu0 %526, %v505
        %v528 = vpop.permute.xlu0 %527
        %531 = vset.pattern.permute.xlu0 0
        %532 = vperm.xlu0 %531, %v506
        %v533 = vpop.permute.xlu0 %532
        %536 = vset.pattern.permute.xlu0 0
        %537 = vperm.xlu0 %536, %v507
        %v538 = vpop.permute.xlu0 %537
        %541 = vset.pattern.permute.xlu0 0
        %542 = vperm.xlu0 %541, %v508
        %v543 = vpop.permute.xlu0 %542
        %546 = vset.pattern.permute.xlu0 0
        %547 = vperm.xlu0 %546, %v509
        %v548 = vpop.permute.xlu0 %547
        %551 = vset.pattern.permute.xlu0 0
        %552 = vperm.xlu0 %551, %v510
        %v553 = vpop.permute.xlu0 %552
        %556 = vset.pattern.permute.xlu0 0
        %557 = vperm.xlu0 %556, %v511
        %v558 = vpop.permute.xlu0 %557
        %561 = vset.pattern.permute.xlu0 0
        %562 = vperm.xlu0 %561, %v512
        %v563 = vpop.permute.xlu0 %562
        %566 = vset.pattern.permute.xlu0 0
        %567 = vperm.xlu0 %566, %v513
        %v568 = vpop.permute.xlu0 %567
        %571 = vset.pattern.permute.xlu0 0
        %572 = vperm.xlu0 %571, %v514
        %v573 = vpop.permute.xlu0 %572
        %576 = vset.pattern.permute.xlu0 0
        %577 = vperm.xlu0 %576, %v515
        %v578 = vpop.permute.xlu0 %577
        %581 = vset.pattern.permute.xlu0 0
        %582 = vperm.xlu0 %581, %v516
        %v583 = vpop.permute.xlu0 %582
        %586 = vset.pattern.permute.xlu0 0
        %587 = vperm.xlu0 %586, %v517
        %v588 = vpop.permute.xlu0 %587
        %591 = vset.pattern.permute.xlu0 0
        %592 = vperm.xlu0 %591, %v518
        %v593 = vpop.permute.xlu0 %592
        %596 = vset.pattern.permute.xlu0 0
        %597 = vperm.xlu0 %596, %v519
        %v598 = vpop.permute.xlu0 %597
        %v600 = vlaneseq
        %v601 = vshrl.u32 %v600, 7
        %v602 = vsub.s32 0, %v601
        %v603 = vrot.slane %v502, %v602
        %v604 = vsub.f32 %v523, %v603
        %v605 = vsub.f32 %v528, %v603
        %v606 = vsub.f32 %v533, %v603
        %v607 = vsub.f32 %v538, %v603
        %v608 = vsub.f32 %v543, %v603
        %v609 = vsub.f32 %v548, %v603
        %v610 = vsub.f32 %v553, %v603
        %v611 = vsub.f32 %v558, %v603
        %v612 = vsub.f32 %v563, %v603
        %v613 = vsub.f32 %v568, %v603
        %v614 = vsub.f32 %v573, %v603
        %v615 = vsub.f32 %v578, %v603
        %v616 = vsub.f32 %v583, %v603
        %v617 = vsub.f32 %v588, %v603
        %v618 = vsub.f32 %v593, %v603
        %v619 = vsub.f32 %v598, %v603
        %620 = vset.pattern.permute.xlu0 1
        %621 = vperm.xlu0 %620, %v504
        %v622 = vpop.permute.xlu0 %621
        %624 = vset.pattern.permute.xlu0 1
        %625 = vperm.xlu0 %624, %v505
        %v626 = vpop.permute.xlu0 %625
        %628 = vset.pattern.permute.xlu0 1
        %629 = vperm.xlu0 %628, %v506
        %v630 = vpop.permute.xlu0 %629
        %632 = vset.pattern.permute.xlu0 1
        %633 = vperm.xlu0 %632, %v507
        %v634 = vpop.permute.xlu0 %633
        %636 = vset.pattern.permute.xlu0 1
        %637 = vperm.xlu0 %636, %v508
        %v638 = vpop.permute.xlu0 %637
        %640 = vset.pattern.permute.xlu0 1
        %641 = vperm.xlu0 %640, %v509
        %v642 = vpop.permute.xlu0 %641
        %644 = vset.pattern.permute.xlu0 1
        %645 = vperm.xlu0 %644, %v510
        %v646 = vpop.permute.xlu0 %645
        %648 = vset.pattern.permute.xlu0 1
        %649 = vperm.xlu0 %648, %v511
        %v650 = vpop.permute.xlu0 %649
        %652 = vset.pattern.permute.xlu0 1
        %653 = vperm.xlu0 %652, %v512
        %v654 = vpop.permute.xlu0 %653
        %656 = vset.pattern.permute.xlu0 1
        %657 = vperm.xlu0 %656, %v513
        %v658 = vpop.permute.xlu0 %657
        %660 = vset.pattern.permute.xlu0 1
        %661 = vperm.xlu0 %660, %v514
        %v662 = vpop.permute.xlu0 %661
        %664 = vset.pattern.permute.xlu0 1
        %665 = vperm.xlu0 %664, %v515
        %v666 = vpop.permute.xlu0 %665
        %668 = vset.pattern.permute.xlu0 1
        %669 = vperm.xlu0 %668, %v516
        %v670 = vpop.permute.xlu0 %669
        %672 = vset.pattern.permute.xlu0 1
        %673 = vperm.xlu0 %672, %v517
        %v674 = vpop.permute.xlu0 %673
        %676 = vset.pattern.permute.xlu0 1
        %677 = vperm.xlu0 %676, %v518
        %v678 = vpop.permute.xlu0 %677
        %680 = vset.pattern.permute.xlu0 1
        %681 = vperm.xlu0 %680, %v519
        %v682 = vpop.permute.xlu0 %681
        %v684 = vlaneseq
        %v685 = vshrl.u32 %v684, 7
        %v686 = vsub.s32 1, %v685
        %v687 = vrot.slane %v502, %v686
        %v688 = vsub.f32 %v622, %v687
        %v689 = vsub.f32 %v626, %v687
        %v690 = vsub.f32 %v630, %v687
        %v691 = vsub.f32 %v634, %v687
        %v692 = vsub.f32 %v638, %v687
        %v693 = vsub.f32 %v642, %v687
        %v694 = vsub.f32 %v646, %v687
        %v695 = vsub.f32 %v650, %v687
        %v696 = vsub.f32 %v654, %v687
        %v697 = vsub.f32 %v658, %v687
        %v698 = vsub.f32 %v662, %v687
        %v699 = vsub.f32 %v666, %v687
        %v700 = vsub.f32 %v670, %v687
        %v701 = vsub.f32 %v674, %v687
        %v702 = vsub.f32 %v678, %v687
        %v703 = vsub.f32 %v682, %v687
        %v704 = vmul.f32 %v604, %v604
        %v705 = vmul.f32 %v605, %v605
        %v706 = vmul.f32 %v606, %v606
        %v707 = vmul.f32 %v607, %v607
        %v708 = vmul.f32 %v608, %v608
        %v709 = vmul.f32 %v609, %v609
        %v710 = vmul.f32 %v610, %v610
        %v711 = vmul.f32 %v611, %v611
        %v712 = vmul.f32 %v612, %v612
        %v713 = vmul.f32 %v613, %v613
        %v714 = vmul.f32 %v614, %v614
        %v715 = vmul.f32 %v615, %v615
        %v716 = vmul.f32 %v616, %v616
        %v717 = vmul.f32 %v617, %v617
        %v718 = vmul.f32 %v618, %v618
        %v719 = vmul.f32 %v619, %v619
        %v720 = vmul.f32 %v688, %v688
        %v721 = vmul.f32 %v689, %v689
        %v722 = vmul.f32 %v690, %v690
        %v723 = vmul.f32 %v691, %v691
        %v724 = vmul.f32 %v692, %v692
        %v725 = vmul.f32 %v693, %v693
        %v726 = vmul.f32 %v694, %v694
        %v727 = vmul.f32 %v695, %v695
        %v728 = vmul.f32 %v696, %v696
        %v729 = vmul.f32 %v697, %v697
        %v730 = vmul.f32 %v698, %v698
        %v731 = vmul.f32 %v699, %v699
        %v732 = vmul.f32 %v700, %v700
        %v733 = vmul.f32 %v701, %v701
        %v734 = vmul.f32 %v702, %v702
        %v735 = vmul.f32 %v703, %v703
        %v736 = vadd.f32 %v704, %v720
        %v737 = vadd.f32 %v705, %v721
        %v738 = vadd.f32 %v706, %v722
        %v739 = vadd.f32 %v707, %v723
        %v740 = vadd.f32 %v708, %v724
        %v741 = vadd.f32 %v709, %v725
        %v742 = vadd.f32 %v710, %v726
        %v743 = vadd.f32 %v711, %v727
        %v744 = vadd.f32 %v712, %v728
        %v745 = vadd.f32 %v713, %v729
        %v746 = vadd.f32 %v714, %v730
        %v747 = vadd.f32 %v715, %v731
        %v748 = vadd.f32 %v716, %v732
        %v749 = vadd.f32 %v717, %v733
        %v750 = vadd.f32 %v718, %v734
        %v751 = vadd.f32 %v719, %v735
        %v752 = vmin.f32 %v736, %v740
        %v753 = vmin.f32 %v737, %v741
        %v754 = vmin.f32 %v738, %v742
        %v755 = vmin.f32 %v739, %v743
        %v756 = vmin.f32 %v752, %v744
        %v757 = vmin.f32 %v753, %v745
        %v758 = vmin.f32 %v754, %v746
        %v759 = vmin.f32 %v755, %v747
        %v760 = vmin.f32 %v756, %v748
        %v761 = vmin.f32 %v757, %v749
        %v762 = vmin.f32 %v758, %v750
        %v763 = vmin.f32 %v759, %v751
        %v764 = vmin.f32 %v760, %v761
        %v765 = vmin.f32 %v762, %v763
        %v766 = vmin.f32 %v764, %v765
        %v767 = vrot.slane %v766, 4
        %v768 = vmin.f32 %v766, %v767
        %v769 = vrot.slane %v768, 2
        %v770 = vmin.f32 %v768, %v769
        %v771 = vrot.slane %v770, 1
        %v772 = vmin.f32 %v770, %v771
        %v773 = vrsqrt.pop %v772
        %v774 = vmul.f32 %v772, %v773
        %vm775 = vcmp.eq.f32.partialorder %v772, inf
        %v776 = vsel %vm775, %v772, %v774
        %vm777 = vcmp.eq.f32.partialorder %v772, 0.0
        %v778 = vand.u32 %v772, 2147483648
        %v779 = vsel %vm777, %v778, %v776
        %v780 = vadd.f32 %v500, %v779
        %s781 = scalar_lea.vmem %s197, 4 [#allocation2]
        %v782 = vld [vmem:[%s781] sm:$0x3]
        %s783 = scalar_lea.vmem %s1, 256
        %v784 = vld [vmem:[%s783] sm:$0xff]
        %v785 = vld [vmem:[%s783 + $0x8] sm:$0xff]
        %v786 = vld [vmem:[%s783 + $0x10] sm:$0xff]
        %v787 = vld [vmem:[%s783 + $0x18] sm:$0xff]
        %v788 = vld [vmem:[%s783 + $0x20] sm:$0xff]
        %v789 = vld [vmem:[%s783 + $0x28] sm:$0xff]
        %v790 = vld [vmem:[%s783 + $0x30] sm:$0xff]
        %v791 = vld [vmem:[%s783 + $0x38] sm:$0xff]
        %v792 = vld [vmem:[%s783 + $0x40] sm:$0xff]
        %v793 = vld [vmem:[%s783 + $0x48] sm:$0xff]
        %v794 = vld [vmem:[%s783 + $0x50] sm:$0xff]
        %v795 = vld [vmem:[%s783 + $0x58] sm:$0xff]
        %v796 = vld [vmem:[%s783 + $0x60] sm:$0xff]
        %v797 = vld [vmem:[%s783 + $0x68] sm:$0xff]
        %v798 = vld [vmem:[%s783 + $0x70] sm:$0xff]
        %v799 = vld [vmem:[%s783 + $0x78] sm:$0xff]
        %801 = vset.pattern.permute.xlu0 0
        %802 = vperm.xlu0 %801, %v784
        %v803 = vpop.permute.xlu0 %802
        %806 = vset.pattern.permute.xlu0 0
        %807 = vperm.xlu0 %806, %v785
        %v808 = vpop.permute.xlu0 %807
        %811 = vset.pattern.permute.xlu0 0
        %812 = vperm.xlu0 %811, %v786
        %v813 = vpop.permute.xlu0 %812
        %816 = vset.pattern.permute.xlu0 0
        %817 = vperm.xlu0 %816, %v787
        %v818 = vpop.permute.xlu0 %817
        %821 = vset.pattern.permute.xlu0 0
        %822 = vperm.xlu0 %821, %v788
        %v823 = vpop.permute.xlu0 %822
        %826 = vset.pattern.permute.xlu0 0
        %827 = vperm.xlu0 %826, %v789
        %v828 = vpop.permute.xlu0 %827
        %831 = vset.pattern.permute.xlu0 0
        %832 = vperm.xlu0 %831, %v790
        %v833 = vpop.permute.xlu0 %832
        %836 = vset.pattern.permute.xlu0 0
        %837 = vperm.xlu0 %836, %v791
        %v838 = vpop.permute.xlu0 %837
        %841 = vset.pattern.permute.xlu0 0
        %842 = vperm.xlu0 %841, %v792
        %v843 = vpop.permute.xlu0 %842
        %846 = vset.pattern.permute.xlu0 0
        %847 = vperm.xlu0 %846, %v793
        %v848 = vpop.permute.xlu0 %847
        %851 = vset.pattern.permute.xlu0 0
        %852 = vperm.xlu0 %851, %v794
        %v853 = vpop.permute.xlu0 %852
        %856 = vset.pattern.permute.xlu0 0
        %857 = vperm.xlu0 %856, %v795
        %v858 = vpop.permute.xlu0 %857
        %861 = vset.pattern.permute.xlu0 0
        %862 = vperm.xlu0 %861, %v796
        %v863 = vpop.permute.xlu0 %862
        %866 = vset.pattern.permute.xlu0 0
        %867 = vperm.xlu0 %866, %v797
        %v868 = vpop.permute.xlu0 %867
        %871 = vset.pattern.permute.xlu0 0
        %872 = vperm.xlu0 %871, %v798
        %v873 = vpop.permute.xlu0 %872
        %876 = vset.pattern.permute.xlu0 0
        %877 = vperm.xlu0 %876, %v799
        %v878 = vpop.permute.xlu0 %877
        %v880 = vlaneseq
        %v881 = vshrl.u32 %v880, 7
        %v882 = vsub.s32 0, %v881
        %v883 = vrot.slane %v782, %v882
        %v884 = vsub.f32 %v803, %v883
        %v885 = vsub.f32 %v808, %v883
        %v886 = vsub.f32 %v813, %v883
        %v887 = vsub.f32 %v818, %v883
        %v888 = vsub.f32 %v823, %v883
        %v889 = vsub.f32 %v828, %v883
        %v890 = vsub.f32 %v833, %v883
        %v891 = vsub.f32 %v838, %v883
        %v892 = vsub.f32 %v843, %v883
        %v893 = vsub.f32 %v848, %v883
        %v894 = vsub.f32 %v853, %v883
        %v895 = vsub.f32 %v858, %v883
        %v896 = vsub.f32 %v863, %v883
        %v897 = vsub.f32 %v868, %v883
        %v898 = vsub.f32 %v873, %v883
        %v899 = vsub.f32 %v878, %v883
        %900 = vset.pattern.permute.xlu0 1
        %901 = vperm.xlu0 %900, %v784
        %v902 = vpop.permute.xlu0 %901
        %904 = vset.pattern.permute.xlu0 1
        %905 = vperm.xlu0 %904, %v785
        %v906 = vpop.permute.xlu0 %905
        %908 = vset.pattern.permute.xlu0 1
        %909 = vperm.xlu0 %908, %v786
        %v910 = vpop.permute.xlu0 %909
        %912 = vset.pattern.permute.xlu0 1
        %913 = vperm.xlu0 %912, %v787
        %v914 = vpop.permute.xlu0 %913
        %916 = vset.pattern.permute.xlu0 1
        %917 = vperm.xlu0 %916, %v788
        %v918 = vpop.permute.xlu0 %917
        %920 = vset.pattern.permute.xlu0 1
        %921 = vperm.xlu0 %920, %v789
        %v922 = vpop.permute.xlu0 %921
        %924 = vset.pattern.permute.xlu0 1
        %925 = vperm.xlu0 %924, %v790
        %v926 = vpop.permute.xlu0 %925
        %928 = vset.pattern.permute.xlu0 1
        %929 = vperm.xlu0 %928, %v791
        %v930 = vpop.permute.xlu0 %929
        %932 = vset.pattern.permute.xlu0 1
        %933 = vperm.xlu0 %932, %v792
        %v934 = vpop.permute.xlu0 %933
        %936 = vset.pattern.permute.xlu0 1
        %937 = vperm.xlu0 %936, %v793
        %v938 = vpop.permute.xlu0 %937
        %940 = vset.pattern.permute.xlu0 1
        %941 = vperm.xlu0 %940, %v794
        %v942 = vpop.permute.xlu0 %941
        %944 = vset.pattern.permute.xlu0 1
        %945 = vperm.xlu0 %944, %v795
        %v946 = vpop.permute.xlu0 %945
        %948 = vset.pattern.permute.xlu0 1
        %949 = vperm.xlu0 %948, %v796
        %v950 = vpop.permute.xlu0 %949
        %952 = vset.pattern.permute.xlu0 1
        %953 = vperm.xlu0 %952, %v797
        %v954 = vpop.permute.xlu0 %953
        %956 = vset.pattern.permute.xlu0 1
        %957 = vperm.xlu0 %956, %v798
        %v958 = vpop.permute.xlu0 %957
        %960 = vset.pattern.permute.xlu0 1
        %961 = vperm.xlu0 %960, %v799
        %v962 = vpop.permute.xlu0 %961
        %v964 = vlaneseq
        %v965 = vshrl.u32 %v964, 7
        %v966 = vsub.s32 1, %v965
        %v967 = vrot.slane %v782, %v966
        %v968 = vsub.f32 %v902, %v967
        %v969 = vsub.f32 %v906, %v967
        %v970 = vsub.f32 %v910, %v967
        %v971 = vsub.f32 %v914, %v967
        %v972 = vsub.f32 %v918, %v967
        %v973 = vsub.f32 %v922, %v967
        %v974 = vsub.f32 %v926, %v967
        %v975 = vsub.f32 %v930, %v967
        %v976 = vsub.f32 %v934, %v967
        %v977 = vsub.f32 %v938, %v967
        %v978 = vsub.f32 %v942, %v967
        %v979 = vsub.f32 %v946, %v967
        %v980 = vsub.f32 %v950, %v967
        %v981 = vsub.f32 %v954, %v967
        %v982 = vsub.f32 %v958, %v967
        %v983 = vsub.f32 %v962, %v967
        %v984 = vmul.f32 %v884, %v884
        %v985 = vmul.f32 %v885, %v885
        %v986 = vmul.f32 %v886, %v886
        %v987 = vmul.f32 %v887, %v887
        %v988 = vmul.f32 %v888, %v888
        %v989 = vmul.f32 %v889, %v889
        %v990 = vmul.f32 %v890, %v890
        %v991 = vmul.f32 %v891, %v891
        %v992 = vmul.f32 %v892, %v892
        %v993 = vmul.f32 %v893, %v893
        %v994 = vmul.f32 %v894, %v894
        %v995 = vmul.f32 %v895, %v895
        %v996 = vmul.f32 %v896, %v896
        %v997 = vmul.f32 %v897, %v897
        %v998 = vmul.f32 %v898, %v898
        %v999 = vmul.f32 %v899, %v899
        %v1000 = vmul.f32 %v968, %v968
        %v1001 = vmul.f32 %v969, %v969
        %v1002 = vmul.f32 %v970, %v970
        %v1003 = vmul.f32 %v971, %v971
        %v1004 = vmul.f32 %v972, %v972
        %v1005 = vmul.f32 %v973, %v973
        %v1006 = vmul.f32 %v974, %v974
        %v1007 = vmul.f32 %v975, %v975
        %v1008 = vmul.f32 %v976, %v976
        %v1009 = vmul.f32 %v977, %v977
        %v1010 = vmul.f32 %v978, %v978
        %v1011 = vmul.f32 %v979, %v979
        %v1012 = vmul.f32 %v980, %v980
        %v1013 = vmul.f32 %v981, %v981
        %v1014 = vmul.f32 %v982, %v982
        %v1015 = vmul.f32 %v983, %v983
        %v1016 = vadd.f32 %v984, %v1000
        %v1017 = vadd.f32 %v985, %v1001
        %v1018 = vadd.f32 %v986, %v1002
        %v1019 = vadd.f32 %v987, %v1003
        %v1020 = vadd.f32 %v988, %v1004
        %v1021 = vadd.f32 %v989, %v1005
        %v1022 = vadd.f32 %v990, %v1006
        %v1023 = vadd.f32 %v991, %v1007
        %v1024 = vadd.f32 %v992, %v1008
        %v1025 = vadd.f32 %v993, %v1009
        %v1026 = vadd.f32 %v994, %v1010
        %v1027 = vadd.f32 %v995, %v1011
        %v1028 = vadd.f32 %v996, %v1012
        %v1029 = vadd.f32 %v997, %v1013
        %v1030 = vadd.f32 %v998, %v1014
        %v1031 = vadd.f32 %v999, %v1015
        %v1032 = vmin.f32 %v1016, %v1020
        %v1033 = vmin.f32 %v1017, %v1021
        %v1034 = vmin.f32 %v1018, %v1022
        %v1035 = vmin.f32 %v1019, %v1023
        %v1036 = vmin.f32 %v1032, %v1024
        %v1037 = vmin.f32 %v1033, %v1025
        %v1038 = vmin.f32 %v1034, %v1026
        %v1039 = vmin.f32 %v1035, %v1027
        %v1040 = vmin.f32 %v1036, %v1028
        %v1041 = vmin.f32 %v1037, %v1029
        %v1042 = vmin.f32 %v1038, %v1030
        %v1043 = vmin.f32 %v1039, %v1031
        %v1044 = vmin.f32 %v1040, %v1041
        %v1045 = vmin.f32 %v1042, %v1043
        %v1046 = vmin.f32 %v1044, %v1045
        %v1047 = vrot.slane %v1046, 4
        %v1048 = vmin.f32 %v1046, %v1047
        %v1049 = vrot.slane %v1048, 2
        %v1050 = vmin.f32 %v1048, %v1049
        %v1051 = vrot.slane %v1050, 1
        %v1052 = vmin.f32 %v1050, %v1051
        %v1053 = vrsqrt.pop %v1052
        %v1054 = vmul.f32 %v1052, %v1053
        %vm1055 = vcmp.eq.f32.partialorder %v1052, inf
        %v1056 = vsel %vm1055, %v1052, %v1054
        %vm1057 = vcmp.eq.f32.partialorder %v1052, 0.0
        %v1058 = vand.u32 %v1052, 2147483648
        %v1059 = vsel %vm1057, %v1058, %v1056
        %v1060 = vadd.f32 %v780, %v1059
        %v1061 = vmul.f32 %v1060, 0.33333334
        %vm1062 = vcmp.lt.f32.partialorder %v1061, 0.001
        %v1063 = vsel %vm1062, 1, 0
        %v1064 = vcvt.s32.f32 %v1063
        %v1065 = vmul.f32 %v1061, %v1061
        %v1066 = vsub.f32 0.0, %v1065
        %v1067 = vrcp.pop 0.08
        %v1068 = vmul.f32 %v1066, %v1067
        %v1069 = vmul.f32 %v1068, 1.442695
        %v1070 = vpow.pop %v1069
        %v1071 = vsub.f32 1.0, %v1070
        %v1072 = vld [vmem:[%s222] sm:$0x1]
        %v1073 = vmul.f32 %v1072, -0.07
        %v1074 = vmul.f32 %v1073, 1.442695
        %v1075 = vpow.pop %v1074
        %v1076 = vsub.f32 1.0, %v1075
        %v1077 = vmax.f32 %v1076, 0.0
        %v1078 = vmin.f32 %v1077, 1.1
        %v1079 = vmax.f32 %v1078, 0.0001
        %v1080 = vmin.f32 %v1079, 0.9999
        %v1081 = vsub.f32 1.0, %v1078
        %v1082 = vmax.f32 %v1081, 0.0001
        %v1083 = vmin.f32 %v1082, 0.9999
        %v1084 = vlog2.pop %v1080
        %v1085 = vmul.f32 %v1084, 0.6931472
        %v1086 = vmul.f32 %v1064, %v1085
        %v1087 = vsub.f32 1.0, %v1064
        %v1088 = vlog2.pop %v1083
        %v1089 = vmul.f32 %v1088, 0.6931472
        %v1090 = vmul.f32 %v1087, %v1089
        %v1091 = vadd.f32 %v1086, %v1090
        %v1092 = vsub.f32 0.0, %v1091
        %v1093 = vmul.f32 %v1092, %v1071
        %1094 = vst [vmem:[%s219] sm:$0x1] %v1093
        %s1095 = sand.u32 %s98, 1
        %s1096 = scalar_lea.sflag [#allocation4], %s1095
        %s1097 = sand.u32 %s98, 1
        %s1098 = scalar_lea.vmem [#allocation3], %s1097
        // Predicated region
        $region67: #{tpu_custom_call.1} parent=61 // pred_check
          %p1099 = pneg %p108
        $region68: #{tpu_custom_call.1} parent=61 // pred_check_branch
          %1101 = sbr.rel (%p1099) target = $region70
        $region69: #{tpu_custom_call.1} parent=61 // pred_region
          %s1103 = ssub.s32 16, 16
          %1104 = vsyncadd %s1096, %s1103
          %s1105 = smul.addr %s17, 16
          %s1106 = scalar_lea.hbm %s3, %s1105
          %s1108 = sshll.u32 %s1098, 4
          %s1109 = int_to_ptr.vmem [resolvable:$true] %s1108
          %1111 = dma.vmem_to_hbm [thread:$0]  %s1109, 16, %s1106, %s1096
        $region70: #{tpu_custom_call.1} parent=61 // pred_fallthru
          _
      $region62: #{tpu_custom_call.1} parent=5 // pred_fallthru
        _
      %p1112 = scmp.le.s32.totalorder 2, %s12
      // Predicated region
      $region71: #{tpu_custom_call.1} parent=5 // pred_check
        %p1113 = pneg %p1112
      $region72: #{tpu_custom_call.1} parent=5 // pred_check_branch
        %1115 = sbr.rel (%p1113) target = $region74
      $region73: #{tpu_custom_call.1} parent=5 // pred_region
        %s1116 = ssub.s32 %s12, 2
        // Predicated region
        $region75: #{tpu_custom_call.1} parent=73 // pred_check
          %p1117 = pneg %p114
        $region76: #{tpu_custom_call.1} parent=73 // pred_check_branch
          %1119 = sbr.rel (%p1117) target = $region78
        $region77: #{tpu_custom_call.1} parent=73 // pred_region
          %s1120 = sand.u32 %s99, 1
          %s1121 = scalar_lea.sflag [#allocation4], %s1120
          %s1122 = sand.u32 %s99, 1
          %s1123 = scalar_lea.vmem [#allocation3], %s1122
          %1124 = dma.done %s1121, 16
        $region78: #{tpu_custom_call.1} parent=73 // pred_fallthru
          _
      $region74: #{tpu_custom_call.1} parent=5 // pred_fallthru
        _
    $region6: #{tpu_custom_call.1} parent=1 // loop_footer
      %s16 = sadd.s32 1, %s12
    $region7: #{tpu_custom_call.1} parent=1 // loop_footer_branch
      %11 = sbr.rel target = $region3
    $region8: #{tpu_custom_call.1} parent=1 // loop_exit
      _
    %1125 = vsyncpa [#allocation4], 1
    %s1126 = scalar_lea.sflag [#allocation4], 1
    %1127 = vsyncpa %s1126, 1

</llo_original>
